<compile_context>
chip_gen: v7x
topology: tpu7x:2x2x1
jax: 0.10.0
libtpu: 0.0.40
codegen_flags: <defaults>
</compile_context>

<pallas_src>
import functools

import jax
import jax.numpy as jnp
from jax import lax
from jax.experimental import pallas as pl
from jax.experimental.pallas import tpu as pltpu


HIDDEN = 256  # fixed by the module (self.hidden_size = 256)


def words_rnn_kernel(
    x_ref, wih_ref, whh_ref, b_ref, wout_ref, bout_ref, y_ref, *, seq_len, batch_p
):
    """Full forward pass in one gridless kernel invocation.

    x_ref   : (T*BP, F)  bf16, time-major flattened, batch zero-padded to BP
    wih_ref : (F, H)     bf16, W_ih^T
    whh_ref : (H, H)     bf16, W_hh^T
    b_ref   : (1, H)     f32,  b_ih + b_hh
    wout_ref: (H, OP)    bf16, W_out^T zero-padded to OP lanes
    bout_ref: (1, OP)    f32,  b_out zero-padded
    y_ref   : (BP, OP)   f32,  Linear(final hidden), lane-dense store
    """
    # ---- Hoisted input projection: one bf16 GEMM + ONE bias broadcast ---------
    xw = (
        jnp.dot(x_ref[...], wih_ref[...], preferred_element_type=jnp.float32)
        + b_ref[...]
    )

    # W_hh loaded from VMEM once; loop-invariant MXU RHS across all unrolled steps.
    whh = whh_ref[...]
    hidden = whh.shape[1]

    # ---- Recurrence: fully unrolled (seq_len static) ---------------------------
    # Per step: one bf16 MXU matmul, one VPU add, one EUP tanh; h stays f32.
    h = jnp.zeros((batch_p, hidden), jnp.float32)
    for t in range(seq_len):
        x_t = xw[t * batch_p:(t + 1) * batch_p, :]          # whole-vreg static slice
        hw = jnp.dot(
            h.astype(jnp.bfloat16), whh, preferred_element_type=jnp.float32
        )
        h = jnp.tanh(x_t + hw)

    # ---- Output projection on the final hidden state (lane-dense store) --------
    y_ref[...] = (
        jnp.dot(h.astype(jnp.bfloat16), wout_ref[...],
                preferred_element_type=jnp.float32)
        + bout_ref[...]
    )


def prepare_params(params):
    """One-time (outside the per-call path) transpose / pad / cast of the weights."""
    w_ih, w_hh, b_ih, b_hh, w_out, b_out = params
    H = w_hh.shape[0]
    O = w_out.shape[0]
    OP = ((O + 127) // 128) * 128  # lane-dense output width

    wih_t = jnp.transpose(w_ih).astype(jnp.bfloat16)                 # (F, H)
    whh_t = jnp.transpose(w_hh).astype(jnp.bfloat16)                 # (H, H)
    b = (b_ih + b_hh).reshape(1, H).astype(jnp.float32)              # (1, H)
    wout_p = jnp.pad(w_out.astype(jnp.float32), ((0, OP - O), (0, 0)))
    wout_t = jnp.transpose(wout_p).astype(jnp.bfloat16)              # (H, OP)
    bout = jnp.pad(b_out.astype(jnp.float32), (0, OP - O)).reshape(1, OP)

    return (wih_t, whh_t, b, wout_t, bout)


@functools.partial(jax.jit, static_argnums=(2,))
def words_rnn_forward(x, prepared, out_features):
    """x: (B, T, F) batch_first, like PyTorch.  Returns y of shape (1, B, O)."""
    wih_t, whh_t, b, wout_t, bout = prepared
    B, T, F = x.shape
    H = whh_t.shape[0]
    OP = wout_t.shape[1]
    BP = ((B + 7) // 8) * 8  # pad batch to a full 8-sublane block

    # Time-major, batch-padded, flattened, bf16 (the only per-call layout work).
    xt = jnp.transpose(x, (1, 0, 2))                       # (T, B, F)
    xt = jnp.pad(xt, ((0, 0), (0, BP - B), (0, 0)))        # (T, BP, F), pad rows = 0
    x2d = xt.reshape(T * BP, F).astype(jnp.bfloat16)       # (T*BP, F)

    vmem_spec = pl.BlockSpec(memory_space=pltpu.MemorySpace.VMEM)
    kernel = functools.partial(words_rnn_kernel, seq_len=T, batch_p=BP)

    flops = 2 * T * BP * H * (F + H) + 2 * BP * H * OP
    bytes_accessed = (
        x2d.size * x2d.dtype.itemsize
        + sum(a.size * a.dtype.itemsize for a in prepared)
        + BP * OP * 4
    )

    y = pl.pallas_call(
        kernel,
        out_shape=jax.ShapeDtypeStruct((BP, OP), jnp.float32),
        in_specs=[vmem_spec] * 6,
        out_specs=vmem_spec,
        cost_estimate=pl.CostEstimate(
            flops=flops,
            transcendentals=T * BP * H,
            bytes_accessed=bytes_accessed,
        ),
    )(x2d, wih_t, whh_t, b, wout_t, bout)

    # Padded batch rows accumulate tanh(b + h@W_hh) garbage; explicitly sliced away.
    # PyTorch: y = self.out(h) with h of shape (num_layers=1, B, H) -> (1, B, O)
    return y[:B, :out_features].reshape(1, B, out_features)


def _reference_forward_f32(x, params):
    """Pure-JAX f32 reference matching torch.nn.RNN(batch_first=True) + Linear."""
    w_ih, w_hh, b_ih, b_hh, w_out, b_out = params
    B = x.shape[0]
    H = w_hh.shape[0]

    def step(h, x_t):
        h_new = jnp.tanh(x_t @ w_ih.T + b_ih + h @ w_hh.T + b_hh)
        return h_new, None

    x_tm = jnp.transpose(x, (1, 0, 2)).astype(jnp.float32)  # (T, B, F)
    h_final, _ = lax.scan(step, jnp.zeros((B, H), jnp.float32), x_tm)
    y = h_final @ w_out.T + b_out
    return y.reshape(1, B, -1)


def _reference_forward_bf16(x, params):
    """Reference with the same bf16 MXU operands / f32 accumulation as the kernel."""
    w_ih, w_hh, b_ih, b_hh, w_out, b_out = params
    B = x.shape[0]
    H = w_hh.shape[0]
    wih = w_ih.astype(jnp.bfloat16)
    whh = w_hh.astype(jnp.bfloat16)
    wout = w_out.astype(jnp.bfloat16)
    bias = (b_ih + b_hh).astype(jnp.float32)

    def step(h, x_t):
        pre = (
            jnp.dot(x_t.astype(jnp.bfloat16), wih.T, preferred_element_type=jnp.float32)
            + bias
            + jnp.dot(h.astype(jnp.bfloat16), whh.T, preferred_element_type=jnp.float32)
        )
        return jnp.tanh(pre), None

    x_tm = jnp.transpose(x, (1, 0, 2))  # (T, B, F)
    h_final, _ = lax.scan(step, jnp.zeros((B, H), jnp.float32), x_tm)
    y = (
        jnp.dot(h_final.astype(jnp.bfloat16), wout.T, preferred_element_type=jnp.float32)
        + b_out
    )
    return y.reshape(1, B, -1)


def init_params(key, in_features, out_features, hidden=HIDDEN):
    """Deterministic init matching PyTorch's U(-1/sqrt(H), 1/sqrt(H)) convention."""
    ks = jax.random.split(key, 6)
    bound = 1.0 / jnp.sqrt(jnp.float32(hidden))
    u = lambda k, shape: jax.random.uniform(
        k, shape, dtype=jnp.float32, minval=-bound, maxval=bound
    )
    w_ih = u(ks[0], (hidden, in_features))
    w_hh = u(ks[1], (hidden, hidden))
    b_ih = u(ks[2], (hidden,))
    b_hh = u(ks[3], (hidden,))
    w_out = u(ks[4], (out_features, hidden))
    b_out = u(ks[5], (out_features,))
    return (w_ih, w_hh, b_ih, b_hh, w_out, b_out)


if __name__ == "__main__":
    B, T, F, O = 2, 8, 32, 16  # batch, seq, in_features, out_features

    key = jax.random.PRNGKey(0)
    k_x, k_p = jax.random.split(key)
    x = jax.random.normal(k_x, (B, T, F), dtype=jnp.float32)
    params = init_params(k_p, F, O)

    # One-time weight prep (outside the per-call jitted path).
    prepared = jax.block_until_ready(prepare_params(params))

    y = words_rnn_forward(x, prepared, O)
    y = jax.block_until_ready(y)
    assert y.shape == (1, B, O), y.shape

    # Tight check vs. a reference using the same bf16 MXU operands.
    y_ref_bf16 = jax.block_until_ready(_reference_forward_bf16(x, params))
    assert jnp.allclose(y, y_ref_bf16, atol=1e-3, rtol=1e-3), "mismatch vs bf16 reference"

    # Semantics check vs. the full-f32 PyTorch-equivalent reference (loose tolerance
    # because MXU operands are bf16).
    y_ref_f32 = jax.block_until_ready(_reference_forward_f32(x, params))
    assert jnp.allclose(y, y_ref_f32, atol=5e-2, rtol=5e-2), "mismatch vs f32 reference"

    print("KERNEL_OK")
</pallas_src>

<mosaic_0001>
module attributes {stable_mosaic.version = 11 : i64} {
  func.func @words_rnn_kernel(%arg0: memref<64x32xbf16, #tpu.memory_space<vmem>>, %arg1: memref<32x256xbf16, #tpu.memory_space<vmem>>, %arg2: memref<256x256xbf16, #tpu.memory_space<vmem>>, %arg3: memref<1x256xf32, #tpu.memory_space<vmem>>, %arg4: memref<256x128xbf16, #tpu.memory_space<vmem>>, %arg5: memref<1x128xf32, #tpu.memory_space<vmem>>, %arg6: memref<8x128xf32, #tpu.memory_space<vmem>>) attributes {dimension_semantics = [], scalar_prefetch = 0 : i64, scratch_operands = 0 : i64, tpu.core_type = #tpu.core_type<tc>} {
    %c0 = arith.constant 0 : index
    %c0_0 = arith.constant 0 : index
    %0 = vector.load %arg0[%c0, %c0_0] : memref<64x32xbf16, #tpu.memory_space<vmem>>, vector<64x32xbf16>
    %c0_1 = arith.constant 0 : index
    %c0_2 = arith.constant 0 : index
    %1 = vector.load %arg1[%c0_1, %c0_2] : memref<32x256xbf16, #tpu.memory_space<vmem>>, vector<32x256xbf16>
    %cst = arith.constant dense<0.000000e+00> : vector<64x256xf32>
    %2 = tpu.matmul %0, %1, %cst {dimension_numbers = #tpu.dot_dimension_numbers<[1], [0], [0], [1], [0, 0, 1, 1], [], []>} : vector<64x32xbf16>, vector<32x256xbf16>, vector<64x256xf32> -> vector<64x256xf32>
    %c0_3 = arith.constant 0 : index
    %c0_4 = arith.constant 0 : index
    %3 = vector.load %arg3[%c0_3, %c0_4] : memref<1x256xf32, #tpu.memory_space<vmem>>, vector<1x256xf32>
    %4 = vector.broadcast %3 : vector<1x256xf32> to vector<64x256xf32>
    %5 = arith.addf %2, %4 : vector<64x256xf32>
    %c0_5 = arith.constant 0 : index
    %c0_6 = arith.constant 0 : index
    %6 = vector.load %arg2[%c0_5, %c0_6] : memref<256x256xbf16, #tpu.memory_space<vmem>>, vector<256x256xbf16>
    %cst_7 = arith.constant 0.000000e+00 : f32
    %7 = vector.broadcast %cst_7 : f32 to vector<8x256xf32>
    %8 = vector.extract_strided_slice %5 {offsets = [0, 0], sizes = [8, 256], strides = [1, 1]} : vector<64x256xf32> to vector<8x256xf32>
    %9 = arith.truncf %7 : vector<8x256xf32> to vector<8x256xbf16>
    %cst_8 = arith.constant dense<0.000000e+00> : vector<8x256xf32>
    %10 = tpu.matmul %9, %6, %cst_8 {dimension_numbers = #tpu.dot_dimension_numbers<[1], [0], [0], [1], [0, 0, 1, 1], [], []>} : vector<8x256xbf16>, vector<256x256xbf16>, vector<8x256xf32> -> vector<8x256xf32>
    %11 = arith.addf %8, %10 : vector<8x256xf32>
    %12 = math.tanh %11 : vector<8x256xf32>
    %13 = vector.extract_strided_slice %5 {offsets = [8, 0], sizes = [8, 256], strides = [1, 1]} : vector<64x256xf32> to vector<8x256xf32>
    %14 = arith.truncf %12 : vector<8x256xf32> to vector<8x256xbf16>
    %cst_9 = arith.constant dense<0.000000e+00> : vector<8x256xf32>
    %15 = tpu.matmul %14, %6, %cst_9 {dimension_numbers = #tpu.dot_dimension_numbers<[1], [0], [0], [1], [0, 0, 1, 1], [], []>} : vector<8x256xbf16>, vector<256x256xbf16>, vector<8x256xf32> -> vector<8x256xf32>
    %16 = arith.addf %13, %15 : vector<8x256xf32>
    %17 = math.tanh %16 : vector<8x256xf32>
    %18 = vector.extract_strided_slice %5 {offsets = [16, 0], sizes = [8, 256], strides = [1, 1]} : vector<64x256xf32> to vector<8x256xf32>
    %19 = arith.truncf %17 : vector<8x256xf32> to vector<8x256xbf16>
    %cst_10 = arith.constant dense<0.000000e+00> : vector<8x256xf32>
    %20 = tpu.matmul %19, %6, %cst_10 {dimension_numbers = #tpu.dot_dimension_numbers<[1], [0], [0], [1], [0, 0, 1, 1], [], []>} : vector<8x256xbf16>, vector<256x256xbf16>, vector<8x256xf32> -> vector<8x256xf32>
    %21 = arith.addf %18, %20 : vector<8x256xf32>
    %22 = math.tanh %21 : vector<8x256xf32>
    %23 = vector.extract_strided_slice %5 {offsets = [24, 0], sizes = [8, 256], strides = [1, 1]} : vector<64x256xf32> to vector<8x256xf32>
    %24 = arith.truncf %22 : vector<8x256xf32> to vector<8x256xbf16>
    %cst_11 = arith.constant dense<0.000000e+00> : vector<8x256xf32>
    %25 = tpu.matmul %24, %6, %cst_11 {dimension_numbers = #tpu.dot_dimension_numbers<[1], [0], [0], [1], [0, 0, 1, 1], [], []>} : vector<8x256xbf16>, vector<256x256xbf16>, vector<8x256xf32> -> vector<8x256xf32>
    %26 = arith.addf %23, %25 : vector<8x256xf32>
    %27 = math.tanh %26 : vector<8x256xf32>
    %28 = vector.extract_strided_slice %5 {offsets = [32, 0], sizes = [8, 256], strides = [1, 1]} : vector<64x256xf32> to vector<8x256xf32>
    %29 = arith.truncf %27 : vector<8x256xf32> to vector<8x256xbf16>
    %cst_12 = arith.constant dense<0.000000e+00> : vector<8x256xf32>
    %30 = tpu.matmul %29, %6, %cst_12 {dimension_numbers = #tpu.dot_dimension_numbers<[1], [0], [0], [1], [0, 0, 1, 1], [], []>} : vector<8x256xbf16>, vector<256x256xbf16>, vector<8x256xf32> -> vector<8x256xf32>
    %31 = arith.addf %28, %30 : vector<8x256xf32>
    %32 = math.tanh %31 : vector<8x256xf32>
    %33 = vector.extract_strided_slice %5 {offsets = [40, 0], sizes = [8, 256], strides = [1, 1]} : vector<64x256xf32> to vector<8x256xf32>
    %34 = arith.truncf %32 : vector<8x256xf32> to vector<8x256xbf16>
    %cst_13 = arith.constant dense<0.000000e+00> : vector<8x256xf32>
    %35 = tpu.matmul %34, %6, %cst_13 {dimension_numbers = #tpu.dot_dimension_numbers<[1], [0], [0], [1], [0, 0, 1, 1], [], []>} : vector<8x256xbf16>, vector<256x256xbf16>, vector<8x256xf32> -> vector<8x256xf32>
    %36 = arith.addf %33, %35 : vector<8x256xf32>
    %37 = math.tanh %36 : vector<8x256xf32>
    %38 = vector.extract_strided_slice %5 {offsets = [48, 0], sizes = [8, 256], strides = [1, 1]} : vector<64x256xf32> to vector<8x256xf32>
    %39 = arith.truncf %37 : vector<8x256xf32> to vector<8x256xbf16>
    %cst_14 = arith.constant dense<0.000000e+00> : vector<8x256xf32>
    %40 = tpu.matmul %39, %6, %cst_14 {dimension_numbers = #tpu.dot_dimension_numbers<[1], [0], [0], [1], [0, 0, 1, 1], [], []>} : vector<8x256xbf16>, vector<256x256xbf16>, vector<8x256xf32> -> vector<8x256xf32>
    %41 = arith.addf %38, %40 : vector<8x256xf32>
    %42 = math.tanh %41 : vector<8x256xf32>
    %43 = vector.extract_strided_slice %5 {offsets = [56, 0], sizes = [8, 256], strides = [1, 1]} : vector<64x256xf32> to vector<8x256xf32>
    %44 = arith.truncf %42 : vector<8x256xf32> to vector<8x256xbf16>
    %cst_15 = arith.constant dense<0.000000e+00> : vector<8x256xf32>
    %45 = tpu.matmul %44, %6, %cst_15 {dimension_numbers = #tpu.dot_dimension_numbers<[1], [0], [0], [1], [0, 0, 1, 1], [], []>} : vector<8x256xbf16>, vector<256x256xbf16>, vector<8x256xf32> -> vector<8x256xf32>
    %46 = arith.addf %43, %45 : vector<8x256xf32>
    %47 = math.tanh %46 : vector<8x256xf32>
    %48 = arith.truncf %47 : vector<8x256xf32> to vector<8x256xbf16>
    %c0_16 = arith.constant 0 : index
    %c0_17 = arith.constant 0 : index
    %49 = vector.load %arg4[%c0_16, %c0_17] : memref<256x128xbf16, #tpu.memory_space<vmem>>, vector<256x128xbf16>
    %cst_18 = arith.constant dense<0.000000e+00> : vector<8x128xf32>
    %50 = tpu.matmul %48, %49, %cst_18 {dimension_numbers = #tpu.dot_dimension_numbers<[1], [0], [0], [1], [0, 0, 1, 1], [], []>} : vector<8x256xbf16>, vector<256x128xbf16>, vector<8x128xf32> -> vector<8x128xf32>
    %c0_19 = arith.constant 0 : index
    %c0_20 = arith.constant 0 : index
    %51 = vector.load %arg5[%c0_19, %c0_20] : memref<1x128xf32, #tpu.memory_space<vmem>>, vector<1x128xf32>
    %52 = vector.broadcast %51 : vector<1x128xf32> to vector<8x128xf32>
    %53 = arith.addf %50, %52 : vector<8x128xf32>
    %c0_21 = arith.constant 0 : index
    %c0_22 = arith.constant 0 : index
    %54 = vector.load %arg6[%c0_21, %c0_22] : memref<8x128xf32, #tpu.memory_space<vmem>>, vector<8x128xf32>
    tpu.vector_store %arg6[%c0_21, %c0_22], %53 {strides = array<i32>} : memref<8x128xf32, #tpu.memory_space<vmem>>, vector<8x128xf32>,
    return
  }
}

</mosaic_0001>

<llo_original>
// kernel: words_rnn_forward.1
$region0: #{words_rnn_forward.1}
  #allocation0 [shape = 'u32[]', space=smem, size = 0x4, offset = 0x4, fixed_abs, tag = 'smem constant byte address 0x4 - core index']
  #allocation1 [shape = 'u32[144,128]{1,0:T(1,128)}', space=vmem, size = 0x12000, scoped, tag = 'internal scratch']
  %s0 = inlined_call_operand.vmem [shape: bf16[64,32], index: 0, kind: input, shape index: {}]
  %s1 = inlined_call_operand.vmem [shape: bf16[32,256], index: 1, kind: input, shape index: {}]
  %s2 = inlined_call_operand.hbm [shape: bf16[256,256], index: 2, kind: input, shape index: {}]
  %s3 = inlined_call_operand.vmem [shape: f32[1,256], index: 3, kind: input, shape index: {}]
  %s4 = inlined_call_operand.hbm [shape: bf16[256,128], index: 4, kind: input, shape index: {}]
  %s5 = inlined_call_operand.vmem [shape: f32[1,128], index: 5, kind: input, shape index: {}]
  %s6 = inlined_call_operand.vmem [shape: f32[8,128], index: 6, kind: output, shape index: {}]
  %s7 = sld [smem:[#allocation0]]
  $region42: #{words_rnn_forward.1} parent=0
    _
  %s9 = ssub.s32 1, %s7
  %s10 = scalar_select 0, %s9, %s7
  $region1: #{words_rnn_forward.1} parent=0
    #allocation2 [shape = 'u8[131072]{0}', space=vmem, size = 0x20000, scoped, tag = 'input window, operand 2, single buffered']
    #allocation3 [shape = 's32[1]{0}', space=sflag, size = 0x4, scoped, tag = 'scoped memory for words_rnn_forward.1']
    #allocation4 [shape = 'u8[65536]{0}', space=vmem, size = 0x10000, scoped, tag = 'input window, operand 4, single buffered']
    #allocation5 [shape = 's32[1]{0}', space=sflag, size = 0x4, scoped, tag = 'scoped memory for words_rnn_forward.1']
    %11 = vsyncpa [#allocation3], 0
    %12 = vsyncpa [#allocation5], 0
    // Predicated region
    $region2: #{words_rnn_forward.1} parent=1 // pred_check
      _
    $region3: #{words_rnn_forward.1} parent=1 // pred_check_branch
      %14 = sbr.rel (0) target = $region5
    $region4: #{words_rnn_forward.1} parent=1 // pred_region
      _
    $region5: #{words_rnn_forward.1} parent=1 // pred_fallthru
      _
    // Predicated region
    $region6: #{words_rnn_forward.1} parent=1 // pred_check
      _
    $region7: #{words_rnn_forward.1} parent=1 // pred_check_branch
      %16 = sbr.rel (0) target = $region9
    $region8: #{words_rnn_forward.1} parent=1 // pred_region
      _
    $region9: #{words_rnn_forward.1} parent=1 // pred_fallthru
      _
    // Predicated region
    $region10: #{words_rnn_forward.1} parent=1 // pred_check
      _
    $region11: #{words_rnn_forward.1} parent=1 // pred_check_branch
      %18 = sbr.rel (0) target = $region13
    $region12: #{words_rnn_forward.1} parent=1 // pred_region
      %s20 = ssub.s32 4096, 4096
      %21 = vsyncadd [#allocation3], %s20
      %s22 = sshll.u32 [#allocation2], 4
      %s23 = int_to_ptr.vmem [resolvable:$true] %s22
      %28 = dma.hbm_to_vmem [thread:$0]  %s2, 4096, %s23, [#allocation3], 128, 128, 8
    $region13: #{words_rnn_forward.1} parent=1 // pred_fallthru
      _
    // Predicated region
    $region14: #{words_rnn_forward.1} parent=1 // pred_check
      _
    $region15: #{words_rnn_forward.1} parent=1 // pred_check_branch
      %30 = sbr.rel (0) target = $region17
    $region16: #{words_rnn_forward.1} parent=1 // pred_region
      _
    $region17: #{words_rnn_forward.1} parent=1 // pred_fallthru
      _
    // Predicated region
    $region18: #{words_rnn_forward.1} parent=1 // pred_check
      _
    $region19: #{words_rnn_forward.1} parent=1 // pred_check_branch
      %32 = sbr.rel (0) target = $region21
    $region20: #{words_rnn_forward.1} parent=1 // pred_region
      %s34 = ssub.s32 2048, 2048
      %35 = vsyncadd [#allocation5], %s34
      %s36 = sshll.u32 [#allocation4], 4
      %s37 = int_to_ptr.vmem [resolvable:$true] %s36
      %42 = dma.hbm_to_vmem [thread:$0]  %s4, 2048, %s37, [#allocation5], 64, 64, 4
    $region21: #{words_rnn_forward.1} parent=1 // pred_fallthru
      _
    // Predicated region
    $region22: #{words_rnn_forward.1} parent=1 // pred_check
      _
    $region23: #{words_rnn_forward.1} parent=1 // pred_check_branch
      %44 = sbr.rel (0) target = $region25
    $region24: #{words_rnn_forward.1} parent=1 // pred_region
      _
    $region25: #{words_rnn_forward.1} parent=1 // pred_fallthru
      _
    // Predicated region
    $region26: #{words_rnn_forward.1} parent=1 // pred_check
      _
    $region27: #{words_rnn_forward.1} parent=1 // pred_check_branch
      %46 = sbr.rel (0) target = $region29
    $region28: #{words_rnn_forward.1} parent=1 // pred_region
      %47 = dma.done [#allocation3], 4096
    $region29: #{words_rnn_forward.1} parent=1 // pred_fallthru
      _
    // Predicated region
    $region30: #{words_rnn_forward.1} parent=1 // pred_check
      _
    $region31: #{words_rnn_forward.1} parent=1 // pred_check_branch
      %49 = sbr.rel (0) target = $region33
    $region32: #{words_rnn_forward.1} parent=1 // pred_region
      %50 = dma.done [#allocation5], 2048
    $region33: #{words_rnn_forward.1} parent=1 // pred_fallthru
      _
    %v52 = vld [vmem:[%s0] sm:$0xf]
    %v53 = vld [vmem:[%s0 + $0x4] sm:$0xf]
    %v54 = vld [vmem:[%s0 + $0x8] sm:$0xf]
    %v55 = vld [vmem:[%s0 + $0xc] sm:$0xf]
    %v56 = vld [vmem:[%s0 + $0x10] sm:$0xf]
    %v57 = vld [vmem:[%s0 + $0x14] sm:$0xf]
    %v58 = vld [vmem:[%s0 + $0x18] sm:$0xf]
    %v59 = vld [vmem:[%s0 + $0x1c] sm:$0xf]
    %v60 = vld [vmem:[%s1] sm:$0xff]
    %v61 = vld [vmem:[%s1 + $0x8] sm:$0xff]
    %v62 = vld [vmem:[%s1 + $0x10] sm:$0xff]
    %v63 = vld [vmem:[%s1 + $0x18] sm:$0xff]
    %v64 = vld [vmem:[%s3] sm:$0x3]
    %v66 = vlaneseq
    %v67 = vshrl.u32 %v66, 7
    %v68 = vsub.s32 0, %v67
    %v69 = vrot.slane %v64, %v68
    %v70 = vlaneseq
    %v71 = vshrl.u32 %v70, 7
    %v72 = vsub.s32 1, %v71
    %v73 = vrot.slane %v64, %v72
    %v84 = vunpack.c.l.b16 %v52
    %v85 = vunpack.c.l.b16 %v53
    %v86 = vunpack.c.l.b16 %v54
    %v87 = vunpack.c.l.b16 %v55
    %v88 = vunpack.c.l.b16 %v56
    %v89 = vunpack.c.l.b16 %v57
    %v90 = vunpack.c.l.b16 %v58
    %v91 = vunpack.c.l.b16 %v59
    %v92 = vpack.c.b16 %v85, %v84
    %v93 = vpack.c.b16 %v87, %v86
    %v94 = vpack.c.b16 %v89, %v88
    %v95 = vpack.c.b16 %v91, %v90
    %v100 = vunpack.c.l.b16 %v60
    %v101 = vunpack.c.h.b16 %v60
    %v102 = vunpack.c.l.b16 %v61
    %v103 = vunpack.c.h.b16 %v61
    %v104 = vunpack.c.l.b16 %v62
    %v105 = vunpack.c.h.b16 %v62
    %v106 = vunpack.c.l.b16 %v63
    %v107 = vunpack.c.h.b16 %v63
    %v108 = vpack.c.b16 %v102, %v100
    %v109 = vpack.c.b16 %v103, %v101
    %v110 = vpack.c.b16 %v106, %v104
    %v111 = vpack.c.b16 %v107, %v105
    %vm116 = vcmask 261120
    %v118 = vsel %vm116, %v92, 0
    %v121 = vsel %vm116, %v93, 0
    %v124 = vsel %vm116, %v94, 0
    %v127 = vsel %vm116, %v95, 0
    %129 = vmatprep.subr.bf16.mxu0 %v109
    %130 = vmatpush1.bf16.msra.mxu0 %v108
    %131 = vmatprep.subr.bf16.mxu0 %v111
    %132 = vmatpush1.bf16.msra.mxu0 %v110
    %133 = vmatprep.subr.bf16.mxu0 0
    %134 = vmatpush1.bf16.msra.mxu0 0
    %135 = vmatprep.subr.bf16.mxu0 0
    %136 = vmatpush1.bf16.msra.mxu0 0
    %137 = vmatprep.subr.bf16.mxu0 0
    %138 = vmatpush1.bf16.msra.mxu0 0
    %139 = vmatprep.subr.bf16.mxu0 0
    %140 = vmatpush1.bf16.msra.mxu0 0
    %141 = vmatprep.subr.bf16.mxu0 0
    %142 = vmatpush1.bf16.msra.mxu0 0
    %143 = vmatprep.subr.bf16.mxu0 0
    %144 = vmatpush1.bf16.msra.mxu0 0
    %145 = vmatprep.subr.bf16.mxu0 0
    %146 = vmatpush1.bf16.msra.mxu0 0
    %147 = vmatprep.subr.bf16.mxu0 0
    %148 = vmatpush1.bf16.msra.mxu0 0
    %149 = vmatprep.subr.bf16.mxu0 0
    %150 = vmatpush1.bf16.msra.mxu0 0
    %151 = vmatprep.subr.bf16.mxu0 0
    %152 = vmatpush1.bf16.msra.mxu0 0
    %153 = vmatprep.subr.bf16.mxu0 0
    %154 = vmatpush1.bf16.msra.mxu0 0
    %155 = vmatprep.subr.bf16.mxu0 0
    %156 = vmatpush1.bf16.msra.mxu0 0
    %157 = vmatprep.subr.bf16.mxu0 0
    %158 = vmatpush1.bf16.msra.mxu0 0
    %159 = vmatprep.subr.bf16.mxu0 0
    %160 = vmatpush1.bf16.msra.mxu0 0
    %161 = vmatprep.mubr.bf16.mxu0 0
    %162 = vmatmul.mubr.bf16.gmra.mrb[0].mxu0 %v118
    %v163 = vpop.f32.mrb[0].mxu0
    %v164 = vadd.f32 %v69, %v163
    %v165 = vpop.f32.mrb[0].mxu0
    %v166 = vadd.f32 %v73, %v165
    %v167 = vpop.f32.mrb[0].mxu0
    %v168 = vadd.f32 %v69, %v167
    %v169 = vpop.f32.mrb[0].mxu0
    %v170 = vadd.f32 %v73, %v169
    %171 = vmatprep.mubr.bf16.mxu0 0
    %172 = vmatmul.mubr.bf16.gmra.mrb[0].mxu0 %v121
    %v173 = vpop.f32.mrb[0].mxu0
    %v174 = vadd.f32 %v69, %v173
    %v175 = vpop.f32.mrb[0].mxu0
    %v176 = vadd.f32 %v73, %v175
    %v177 = vpop.f32.mrb[0].mxu0
    %v178 = vadd.f32 %v69, %v177
    %v179 = vpop.f32.mrb[0].mxu0
    %v180 = vadd.f32 %v73, %v179
    %181 = vmatprep.mubr.bf16.mxu0 0
    %182 = vmatmul.mubr.bf16.gmra.mrb[0].mxu0 %v124
    %v183 = vpop.f32.mrb[0].mxu0
    %v184 = vadd.f32 %v69, %v183
    %v185 = vpop.f32.mrb[0].mxu0
    %v186 = vadd.f32 %v73, %v185
    %v187 = vpop.f32.mrb[0].mxu0
    %v188 = vadd.f32 %v69, %v187
    %v189 = vpop.f32.mrb[0].mxu0
    %v190 = vadd.f32 %v73, %v189
    %191 = vmatprep.mubr.bf16.mxu0 0
    %192 = vmatmul.mubr.bf16.gmra.mrb[0].mxu0 %v127
    %v193 = vpop.f32.mrb[0].mxu0
    %v194 = vadd.f32 %v69, %v193
    %v195 = vpop.f32.mrb[0].mxu0
    %v196 = vadd.f32 %v73, %v195
    %v197 = vpop.f32.mrb[0].mxu0
    %v198 = vadd.f32 %v69, %v197
    %v199 = vpop.f32.mrb[0].mxu0
    %v200 = vadd.f32 %v73, %v199
    %201 = vdwg.mxu0
    %v202 = vld [vmem:[#allocation2] sm:$0xff]
    %v203 = vld [vmem:[#allocation2 + $0x8] sm:$0xff]
    %v204 = vld [vmem:[#allocation2 + $0x10] sm:$0xff]
    %v205 = vld [vmem:[#allocation2 + $0x18] sm:$0xff]
    %v206 = vld [vmem:[#allocation2 + $0x20] sm:$0xff]
    %v207 = vld [vmem:[#allocation2 + $0x28] sm:$0xff]
    %v208 = vld [vmem:[#allocation2 + $0x30] sm:$0xff]
    %v209 = vld [vmem:[#allocation2 + $0x38] sm:$0xff]
    %v210 = vld [vmem:[#allocation2 + $0x40] sm:$0xff]
    %v211 = vld [vmem:[#allocation2 + $0x48] sm:$0xff]
    %v212 = vld [vmem:[#allocation2 + $0x50] sm:$0xff]
    %v213 = vld [vmem:[#allocation2 + $0x58] sm:$0xff]
    %v214 = vld [vmem:[#allocation2 + $0x60] sm:$0xff]
    %v215 = vld [vmem:[#allocation2 + $0x68] sm:$0xff]
    %v216 = vld [vmem:[#allocation2 + $0x70] sm:$0xff]
    %v217 = vld [vmem:[#allocation2 + $0x78] sm:$0xff]
    %v218 = vld [vmem:[#allocation2 + $0x80] sm:$0xff]
    %v219 = vld [vmem:[#allocation2 + $0x88] sm:$0xff]
    %v220 = vld [vmem:[#allocation2 + $0x90] sm:$0xff]
    %v221 = vld [vmem:[#allocation2 + $0x98] sm:$0xff]
    %v222 = vld [vmem:[#allocation2 + $0xa0] sm:$0xff]
    %v223 = vld [vmem:[#allocation2 + $0xa8] sm:$0xff]
    %v224 = vld [vmem:[#allocation2 + $0xb0] sm:$0xff]
    %v225 = vld [vmem:[#allocation2 + $0xb8] sm:$0xff]
    %v226 = vld [vmem:[#allocation2 + $0xc0] sm:$0xff]
    %v227 = vld [vmem:[#allocation2 + $0xc8] sm:$0xff]
    %v228 = vld [vmem:[#allocation2 + $0xd0] sm:$0xff]
    %v229 = vld [vmem:[#allocation2 + $0xd8] sm:$0xff]
    %v230 = vld [vmem:[#allocation2 + $0xe0] sm:$0xff]
    %v231 = vld [vmem:[#allocation2 + $0xe8] sm:$0xff]
    %v232 = vld [vmem:[#allocation2 + $0xf0] sm:$0xff]
    %v233 = vld [vmem:[#allocation2 + $0xf8] sm:$0xff]
    %v266 = vunpack.c.l.b16 %v202
    %v267 = vunpack.c.h.b16 %v202
    %v268 = vunpack.c.l.b16 %v203
    %v269 = vunpack.c.h.b16 %v203
    %v270 = vunpack.c.l.b16 %v204
    %v271 = vunpack.c.h.b16 %v204
    %v272 = vunpack.c.l.b16 %v205
    %v273 = vunpack.c.h.b16 %v205
    %v274 = vunpack.c.l.b16 %v206
    %v275 = vunpack.c.h.b16 %v206
    %v276 = vunpack.c.l.b16 %v207
    %v277 = vunpack.c.h.b16 %v207
    %v278 = vunpack.c.l.b16 %v208
    %v279 = vunpack.c.h.b16 %v208
    %v280 = vunpack.c.l.b16 %v209
    %v281 = vunpack.c.h.b16 %v209
    %v282 = vunpack.c.l.b16 %v210
    %v283 = vunpack.c.h.b16 %v210
    %v284 = vunpack.c.l.b16 %v211
    %v285 = vunpack.c.h.b16 %v211
    %v286 = vunpack.c.l.b16 %v212
    %v287 = vunpack.c.h.b16 %v212
    %v288 = vunpack.c.l.b16 %v213
    %v289 = vunpack.c.h.b16 %v213
    %v290 = vunpack.c.l.b16 %v214
    %v291 = vunpack.c.h.b16 %v214
    %v292 = vunpack.c.l.b16 %v215
    %v293 = vunpack.c.h.b16 %v215
    %v294 = vunpack.c.l.b16 %v216
    %v295 = vunpack.c.h.b16 %v216
    %v296 = vunpack.c.l.b16 %v217
    %v297 = vunpack.c.h.b16 %v217
    %v298 = vunpack.c.l.b16 %v218
    %v299 = vunpack.c.h.b16 %v218
    %v300 = vunpack.c.l.b16 %v219
    %v301 = vunpack.c.h.b16 %v219
    %v302 = vunpack.c.l.b16 %v220
    %v303 = vunpack.c.h.b16 %v220
    %v304 = vunpack.c.l.b16 %v221
    %v305 = vunpack.c.h.b16 %v221
    %v306 = vunpack.c.l.b16 %v222
    %v307 = vunpack.c.h.b16 %v222
    %v308 = vunpack.c.l.b16 %v223
    %v309 = vunpack.c.h.b16 %v223
    %v310 = vunpack.c.l.b16 %v224
    %v311 = vunpack.c.h.b16 %v224
    %v312 = vunpack.c.l.b16 %v225
    %v313 = vunpack.c.h.b16 %v225
    %v314 = vunpack.c.l.b16 %v226
    %v315 = vunpack.c.h.b16 %v226
    %v316 = vunpack.c.l.b16 %v227
    %v317 = vunpack.c.h.b16 %v227
    %v318 = vunpack.c.l.b16 %v228
    %v319 = vunpack.c.h.b16 %v228
    %v320 = vunpack.c.l.b16 %v229
    %v321 = vunpack.c.h.b16 %v229
    %v322 = vunpack.c.l.b16 %v230
    %v323 = vunpack.c.h.b16 %v230
    %v324 = vunpack.c.l.b16 %v231
    %v325 = vunpack.c.h.b16 %v231
    %v326 = vunpack.c.l.b16 %v232
    %v327 = vunpack.c.h.b16 %v232
    %v328 = vunpack.c.l.b16 %v233
    %v329 = vunpack.c.h.b16 %v233
    %v330 = vpack.c.b16 %v268, %v266
    %v331 = vpack.c.b16 %v269, %v267
    %v332 = vpack.c.b16 %v272, %v270
    %v333 = vpack.c.b16 %v273, %v271
    %v334 = vpack.c.b16 %v276, %v274
    %v335 = vpack.c.b16 %v277, %v275
    %v336 = vpack.c.b16 %v280, %v278
    %v337 = vpack.c.b16 %v281, %v279
    %v338 = vpack.c.b16 %v284, %v282
    %v339 = vpack.c.b16 %v285, %v283
    %v340 = vpack.c.b16 %v288, %v286
    %v341 = vpack.c.b16 %v289, %v287
    %v342 = vpack.c.b16 %v292, %v290
    %v343 = vpack.c.b16 %v293, %v291
    %v344 = vpack.c.b16 %v296, %v294
    %v345 = vpack.c.b16 %v297, %v295
    %v346 = vpack.c.b16 %v300, %v298
    %v347 = vpack.c.b16 %v301, %v299
    %v348 = vpack.c.b16 %v304, %v302
    %v349 = vpack.c.b16 %v305, %v303
    %v350 = vpack.c.b16 %v308, %v306
    %v351 = vpack.c.b16 %v309, %v307
    %v352 = vpack.c.b16 %v312, %v310
    %v353 = vpack.c.b16 %v313, %v311
    %v354 = vpack.c.b16 %v316, %v314
    %v355 = vpack.c.b16 %v317, %v315
    %v356 = vpack.c.b16 %v320, %v318
    %v357 = vpack.c.b16 %v321, %v319
    %v358 = vpack.c.b16 %v324, %v322
    %v359 = vpack.c.b16 %v325, %v323
    %v360 = vpack.c.b16 %v328, %v326
    %v361 = vpack.c.b16 %v329, %v327
    %394 = vmatprep.subr.bf16.mxu0 %v331
    %395 = vmatpush1.bf16.msra.mxu0 %v330
    %396 = vmatprep.subr.bf16.mxu0 %v333
    %397 = vmatpush1.bf16.msra.mxu0 %v332
    %398 = vmatprep.subr.bf16.mxu0 %v335
    %399 = vmatpush1.bf16.msra.mxu0 %v334
    %400 = vmatprep.subr.bf16.mxu0 %v337
    %401 = vmatpush1.bf16.msra.mxu0 %v336
    %402 = vmatprep.subr.bf16.mxu0 %v339
    %403 = vmatpush1.bf16.msra.mxu0 %v338
    %404 = vmatprep.subr.bf16.mxu0 %v341
    %405 = vmatpush1.bf16.msra.mxu0 %v340
    %406 = vmatprep.subr.bf16.mxu0 %v343
    %407 = vmatpush1.bf16.msra.mxu0 %v342
    %408 = vmatprep.subr.bf16.mxu0 %v345
    %409 = vmatpush1.bf16.msra.mxu0 %v344
    %410 = vmatprep.subr.bf16.mxu0 %v347
    %411 = vmatpush1.bf16.msra.mxu0 %v346
    %412 = vmatprep.subr.bf16.mxu0 %v349
    %413 = vmatpush1.bf16.msra.mxu0 %v348
    %414 = vmatprep.subr.bf16.mxu0 %v351
    %415 = vmatpush1.bf16.msra.mxu0 %v350
    %416 = vmatprep.subr.bf16.mxu0 %v353
    %417 = vmatpush1.bf16.msra.mxu0 %v352
    %418 = vmatprep.subr.bf16.mxu0 %v355
    %419 = vmatpush1.bf16.msra.mxu0 %v354
    %420 = vmatprep.subr.bf16.mxu0 %v357
    %421 = vmatpush1.bf16.msra.mxu0 %v356
    %422 = vmatprep.subr.bf16.mxu0 %v359
    %423 = vmatpush1.bf16.msra.mxu0 %v358
    %424 = vmatprep.subr.bf16.mxu0 %v361
    %425 = vmatpush1.bf16.msra.mxu0 %v360
    %426 = vmatprep.mubr.bf16.mxu0 0
    %427 = vmatmul.mubr.bf16.gmra.mrb[0].mxu0 0
    %v428 = vpop.f32.mrb[0].mxu0
    %v429 = vadd.f32 0.0, %v428
    %v430 = vpop.f32.mrb[0].mxu0
    %v431 = vadd.f32 0.0, %v430
    %v432 = vpop.f32.mrb[0].mxu0
    %v433 = vpop.f32.mrb[0].mxu0
    %434 = vdwg.mxu0
    %v435 = vadd.f32 %v164, %v429
    %v436 = vadd.f32 %v166, %v431
    %v437 = vtanh.pop %v435
    %v438 = vtanh.pop %v436
    %v439 = vpack.c.bf16 %v437, %v437
    %v440 = vpack.c.bf16 %v438, %v438
    %441 = vmatprep.subr.bf16.mxu0 %v331
    %442 = vmatpush1.bf16.msra.mxu0 %v330
    %443 = vmatprep.subr.bf16.mxu0 %v333
    %444 = vmatpush1.bf16.msra.mxu0 %v332
    %445 = vmatprep.subr.bf16.mxu0 %v335
    %446 = vmatpush1.bf16.msra.mxu0 %v334
    %447 = vmatprep.subr.bf16.mxu0 %v337
    %448 = vmatpush1.bf16.msra.mxu0 %v336
    %449 = vmatprep.subr.bf16.mxu0 %v339
    %450 = vmatpush1.bf16.msra.mxu0 %v338
    %451 = vmatprep.subr.bf16.mxu0 %v341
    %452 = vmatpush1.bf16.msra.mxu0 %v340
    %453 = vmatprep.subr.bf16.mxu0 %v343
    %454 = vmatpush1.bf16.msra.mxu0 %v342
    %455 = vmatprep.subr.bf16.mxu0 %v345
    %456 = vmatpush1.bf16.msra.mxu0 %v344
    %457 = vmatprep.subr.bf16.mxu0 %v347
    %458 = vmatpush1.bf16.msra.mxu0 %v346
    %459 = vmatprep.subr.bf16.mxu0 %v349
    %460 = vmatpush1.bf16.msra.mxu0 %v348
    %461 = vmatprep.subr.bf16.mxu0 %v351
    %462 = vmatpush1.bf16.msra.mxu0 %v350
    %463 = vmatprep.subr.bf16.mxu0 %v353
    %464 = vmatpush1.bf16.msra.mxu0 %v352
    %465 = vmatprep.subr.bf16.mxu0 %v355
    %466 = vmatpush1.bf16.msra.mxu0 %v354
    %467 = vmatprep.subr.bf16.mxu0 %v357
    %468 = vmatpush1.bf16.msra.mxu0 %v356
    %469 = vmatprep.subr.bf16.mxu0 %v359
    %470 = vmatpush1.bf16.msra.mxu0 %v358
    %471 = vmatprep.subr.bf16.mxu0 %v361
    %472 = vmatpush1.bf16.msra.mxu0 %v360
    %473 = vmatprep.mubr.bf16.mxu0 %v440
    %474 = vmatmul.mubr.bf16.gmra.mrb[0].mxu0 %v439
    %v475 = vpop.f32.mrb[0].mxu0
    %v476 = vadd.f32 0.0, %v475
    %v477 = vpop.f32.mrb[0].mxu0
    %v478 = vadd.f32 0.0, %v477
    %v479 = vpop.f32.mrb[0].mxu0
    %v480 = vpop.f32.mrb[0].mxu0
    %481 = vdwg.mxu0
    %v482 = vadd.f32 %v168, %v476
    %v483 = vadd.f32 %v170, %v478
    %v484 = vtanh.pop %v482
    %v485 = vtanh.pop %v483
    %v486 = vpack.c.bf16 %v484, %v484
    %v487 = vpack.c.bf16 %v485, %v485
    %488 = vmatprep.subr.bf16.mxu0 %v331
    %489 = vmatpush1.bf16.msra.mxu0 %v330
    %490 = vmatprep.subr.bf16.mxu0 %v333
    %491 = vmatpush1.bf16.msra.mxu0 %v332
    %492 = vmatprep.subr.bf16.mxu0 %v335
    %493 = vmatpush1.bf16.msra.mxu0 %v334
    %494 = vmatprep.subr.bf16.mxu0 %v337
    %495 = vmatpush1.bf16.msra.mxu0 %v336
    %496 = vmatprep.subr.bf16.mxu0 %v339
    %497 = vmatpush1.bf16.msra.mxu0 %v338
    %498 = vmatprep.subr.bf16.mxu0 %v341
    %499 = vmatpush1.bf16.msra.mxu0 %v340
    %500 = vmatprep.subr.bf16.mxu0 %v343
    %501 = vmatpush1.bf16.msra.mxu0 %v342
    %502 = vmatprep.subr.bf16.mxu0 %v345
    %503 = vmatpush1.bf16.msra.mxu0 %v344
    %504 = vmatprep.subr.bf16.mxu0 %v347
    %505 = vmatpush1.bf16.msra.mxu0 %v346
    %506 = vmatprep.subr.bf16.mxu0 %v349
    %507 = vmatpush1.bf16.msra.mxu0 %v348
    %508 = vmatprep.subr.bf16.mxu0 %v351
    %509 = vmatpush1.bf16.msra.mxu0 %v350
    %510 = vmatprep.subr.bf16.mxu0 %v353
    %511 = vmatpush1.bf16.msra.mxu0 %v352
    %512 = vmatprep.subr.bf16.mxu0 %v355
    %513 = vmatpush1.bf16.msra.mxu0 %v354
    %514 = vmatprep.subr.bf16.mxu0 %v357
    %515 = vmatpush1.bf16.msra.mxu0 %v356
    %516 = vmatprep.subr.bf16.mxu0 %v359
    %517 = vmatpush1.bf16.msra.mxu0 %v358
    %518 = vmatprep.subr.bf16.mxu0 %v361
    %519 = vmatpush1.bf16.msra.mxu0 %v360
    %520 = vmatprep.mubr.bf16.mxu0 %v487
    %521 = vmatmul.mubr.bf16.gmra.mrb[0].mxu0 %v486
    %v522 = vpop.f32.mrb[0].mxu0
    %v523 = vadd.f32 0.0, %v522
    %v524 = vpop.f32.mrb[0].mxu0
    %v525 = vadd.f32 0.0, %v524
    %v526 = vpop.f32.mrb[0].mxu0
    %v527 = vpop.f32.mrb[0].mxu0
    %528 = vdwg.mxu0
    %v529 = vadd.f32 %v174, %v523
    %v530 = vadd.f32 %v176, %v525
    %v531 = vtanh.pop %v529
    %v532 = vtanh.pop %v530
    %v533 = vpack.c.bf16 %v531, %v531
    %v534 = vpack.c.bf16 %v532, %v532
    %535 = vmatprep.subr.bf16.mxu0 %v331
    %536 = vmatpush1.bf16.msra.mxu0 %v330
    %537 = vmatprep.subr.bf16.mxu0 %v333
    %538 = vmatpush1.bf16.msra.mxu0 %v332
    %539 = vmatprep.subr.bf16.mxu0 %v335
    %540 = vmatpush1.bf16.msra.mxu0 %v334
    %541 = vmatprep.subr.bf16.mxu0 %v337
    %542 = vmatpush1.bf16.msra.mxu0 %v336
    %543 = vmatprep.subr.bf16.mxu0 %v339
    %544 = vmatpush1.bf16.msra.mxu0 %v338
    %545 = vmatprep.subr.bf16.mxu0 %v341
    %546 = vmatpush1.bf16.msra.mxu0 %v340
    %547 = vmatprep.subr.bf16.mxu0 %v343
    %548 = vmatpush1.bf16.msra.mxu0 %v342
    %549 = vmatprep.subr.bf16.mxu0 %v345
    %550 = vmatpush1.bf16.msra.mxu0 %v344
    %551 = vmatprep.subr.bf16.mxu0 %v347
    %552 = vmatpush1.bf16.msra.mxu0 %v346
    %553 = vmatprep.subr.bf16.mxu0 %v349
    %554 = vmatpush1.bf16.msra.mxu0 %v348
    %555 = vmatprep.subr.bf16.mxu0 %v351
    %556 = vmatpush1.bf16.msra.mxu0 %v350
    %557 = vmatprep.subr.bf16.mxu0 %v353
    %558 = vmatpush1.bf16.msra.mxu0 %v352
    %559 = vmatprep.subr.bf16.mxu0 %v355
    %560 = vmatpush1.bf16.msra.mxu0 %v354
    %561 = vmatprep.subr.bf16.mxu0 %v357
    %562 = vmatpush1.bf16.msra.mxu0 %v356
    %563 = vmatprep.subr.bf16.mxu0 %v359
    %564 = vmatpush1.bf16.msra.mxu0 %v358
    %565 = vmatprep.subr.bf16.mxu0 %v361
    %566 = vmatpush1.bf16.msra.mxu0 %v360
    %567 = vmatprep.mubr.bf16.mxu0 %v534
    %568 = vmatmul.mubr.bf16.gmra.mrb[0].mxu0 %v533
    %v569 = vpop.f32.mrb[0].mxu0
    %v570 = vadd.f32 0.0, %v569
    %v571 = vpop.f32.mrb[0].mxu0
    %v572 = vadd.f32 0.0, %v571
    %v573 = vpop.f32.mrb[0].mxu0
    %v574 = vpop.f32.mrb[0].mxu0
    %575 = vdwg.mxu0
    %v576 = vadd.f32 %v178, %v570
    %v577 = vadd.f32 %v180, %v572
    %v578 = vtanh.pop %v576
    %v579 = vtanh.pop %v577
    %v580 = vpack.c.bf16 %v578, %v578
    %v581 = vpack.c.bf16 %v579, %v579
    %582 = vmatprep.subr.bf16.mxu0 %v331
    %583 = vmatpush1.bf16.msra.mxu0 %v330
    %584 = vmatprep.subr.bf16.mxu0 %v333
    %585 = vmatpush1.bf16.msra.mxu0 %v332
    %586 = vmatprep.subr.bf16.mxu0 %v335
    %587 = vmatpush1.bf16.msra.mxu0 %v334
    %588 = vmatprep.subr.bf16.mxu0 %v337
    %589 = vmatpush1.bf16.msra.mxu0 %v336
    %590 = vmatprep.subr.bf16.mxu0 %v339
    %591 = vmatpush1.bf16.msra.mxu0 %v338
    %592 = vmatprep.subr.bf16.mxu0 %v341
    %593 = vmatpush1.bf16.msra.mxu0 %v340
    %594 = vmatprep.subr.bf16.mxu0 %v343
    %595 = vmatpush1.bf16.msra.mxu0 %v342
    %596 = vmatprep.subr.bf16.mxu0 %v345
    %597 = vmatpush1.bf16.msra.mxu0 %v344
    %598 = vmatprep.subr.bf16.mxu0 %v347
    %599 = vmatpush1.bf16.msra.mxu0 %v346
    %600 = vmatprep.subr.bf16.mxu0 %v349
    %601 = vmatpush1.bf16.msra.mxu0 %v348
    %602 = vmatprep.subr.bf16.mxu0 %v351
    %603 = vmatpush1.bf16.msra.mxu0 %v350
    %604 = vmatprep.subr.bf16.mxu0 %v353
    %605 = vmatpush1.bf16.msra.mxu0 %v352
    %606 = vmatprep.subr.bf16.mxu0 %v355
    %607 = vmatpush1.bf16.msra.mxu0 %v354
    %608 = vmatprep.subr.bf16.mxu0 %v357
    %609 = vmatpush1.bf16.msra.mxu0 %v356
    %610 = vmatprep.subr.bf16.mxu0 %v359
    %611 = vmatpush1.bf16.msra.mxu0 %v358
    %612 = vmatprep.subr.bf16.mxu0 %v361
    %613 = vmatpush1.bf16.msra.mxu0 %v360
    %614 = vmatprep.mubr.bf16.mxu0 %v581
    %615 = vmatmul.mubr.bf16.gmra.mrb[0].mxu0 %v580
    %v616 = vpop.f32.mrb[0].mxu0
    %v617 = vadd.f32 0.0, %v616
    %v618 = vpop.f32.mrb[0].mxu0
    %v619 = vadd.f32 0.0, %v618
    %v620 = vpop.f32.mrb[0].mxu0
    %v621 = vpop.f32.mrb[0].mxu0
    %622 = vdwg.mxu0
    %v623 = vadd.f32 %v184, %v617
    %v624 = vadd.f32 %v186, %v619
    %v625 = vtanh.pop %v623
    %v626 = vtanh.pop %v624
    %v627 = vpack.c.bf16 %v625, %v625
    %v628 = vpack.c.bf16 %v626, %v626
    %629 = vmatprep.subr.bf16.mxu0 %v331
    %630 = vmatpush1.bf16.msra.mxu0 %v330
    %631 = vmatprep.subr.bf16.mxu0 %v333
    %632 = vmatpush1.bf16.msra.mxu0 %v332
    %633 = vmatprep.subr.bf16.mxu0 %v335
    %634 = vmatpush1.bf16.msra.mxu0 %v334
    %635 = vmatprep.subr.bf16.mxu0 %v337
    %636 = vmatpush1.bf16.msra.mxu0 %v336
    %637 = vmatprep.subr.bf16.mxu0 %v339
    %638 = vmatpush1.bf16.msra.mxu0 %v338
    %639 = vmatprep.subr.bf16.mxu0 %v341
    %640 = vmatpush1.bf16.msra.mxu0 %v340
    %641 = vmatprep.subr.bf16.mxu0 %v343
    %642 = vmatpush1.bf16.msra.mxu0 %v342
    %643 = vmatprep.subr.bf16.mxu0 %v345
    %644 = vmatpush1.bf16.msra.mxu0 %v344
    %645 = vmatprep.subr.bf16.mxu0 %v347
    %646 = vmatpush1.bf16.msra.mxu0 %v346
    %647 = vmatprep.subr.bf16.mxu0 %v349
    %648 = vmatpush1.bf16.msra.mxu0 %v348
    %649 = vmatprep.subr.bf16.mxu0 %v351
    %650 = vmatpush1.bf16.msra.mxu0 %v350
    %651 = vmatprep.subr.bf16.mxu0 %v353
    %652 = vmatpush1.bf16.msra.mxu0 %v352
    %653 = vmatprep.subr.bf16.mxu0 %v355
    %654 = vmatpush1.bf16.msra.mxu0 %v354
    %655 = vmatprep.subr.bf16.mxu0 %v357
    %656 = vmatpush1.bf16.msra.mxu0 %v356
    %657 = vmatprep.subr.bf16.mxu0 %v359
    %658 = vmatpush1.bf16.msra.mxu0 %v358
    %659 = vmatprep.subr.bf16.mxu0 %v361
    %660 = vmatpush1.bf16.msra.mxu0 %v360
    %661 = vmatprep.mubr.bf16.mxu0 %v628
    %662 = vmatmul.mubr.bf16.gmra.mrb[0].mxu0 %v627
    %v663 = vpop.f32.mrb[0].mxu0
    %v664 = vadd.f32 0.0, %v663
    %v665 = vpop.f32.mrb[0].mxu0
    %v666 = vadd.f32 0.0, %v665
    %v667 = vpop.f32.mrb[0].mxu0
    %v668 = vpop.f32.mrb[0].mxu0
    %669 = vdwg.mxu0
    %v670 = vadd.f32 %v188, %v664
    %v671 = vadd.f32 %v190, %v666
    %v672 = vtanh.pop %v670
    %v673 = vtanh.pop %v671
    %v674 = vpack.c.bf16 %v672, %v672
    %v675 = vpack.c.bf16 %v673, %v673
    %676 = vmatprep.subr.bf16.mxu0 %v331
    %677 = vmatpush1.bf16.msra.mxu0 %v330
    %678 = vmatprep.subr.bf16.mxu0 %v333
    %679 = vmatpush1.bf16.msra.mxu0 %v332
    %680 = vmatprep.subr.bf16.mxu0 %v335
    %681 = vmatpush1.bf16.msra.mxu0 %v334
    %682 = vmatprep.subr.bf16.mxu0 %v337
    %683 = vmatpush1.bf16.msra.mxu0 %v336
    %684 = vmatprep.subr.bf16.mxu0 %v339
    %685 = vmatpush1.bf16.msra.mxu0 %v338
    %686 = vmatprep.subr.bf16.mxu0 %v341
    %687 = vmatpush1.bf16.msra.mxu0 %v340
    %688 = vmatprep.subr.bf16.mxu0 %v343
    %689 = vmatpush1.bf16.msra.mxu0 %v342
    %690 = vmatprep.subr.bf16.mxu0 %v345
    %691 = vmatpush1.bf16.msra.mxu0 %v344
    %692 = vmatprep.subr.bf16.mxu0 %v347
    %693 = vmatpush1.bf16.msra.mxu0 %v346
    %694 = vmatprep.subr.bf16.mxu0 %v349
    %695 = vmatpush1.bf16.msra.mxu0 %v348
    %696 = vmatprep.subr.bf16.mxu0 %v351
    %697 = vmatpush1.bf16.msra.mxu0 %v350
    %698 = vmatprep.subr.bf16.mxu0 %v353
    %699 = vmatpush1.bf16.msra.mxu0 %v352
    %700 = vmatprep.subr.bf16.mxu0 %v355
    %701 = vmatpush1.bf16.msra.mxu0 %v354
    %702 = vmatprep.subr.bf16.mxu0 %v357
    %703 = vmatpush1.bf16.msra.mxu0 %v356
    %704 = vmatprep.subr.bf16.mxu0 %v359
    %705 = vmatpush1.bf16.msra.mxu0 %v358
    %706 = vmatprep.subr.bf16.mxu0 %v361
    %707 = vmatpush1.bf16.msra.mxu0 %v360
    %708 = vmatprep.mubr.bf16.mxu0 %v675
    %709 = vmatmul.mubr.bf16.gmra.mrb[0].mxu0 %v674
    %v710 = vpop.f32.mrb[0].mxu0
    %v711 = vadd.f32 0.0, %v710
    %v712 = vpop.f32.mrb[0].mxu0
    %v713 = vadd.f32 0.0, %v712
    %v714 = vpop.f32.mrb[0].mxu0
    %v715 = vpop.f32.mrb[0].mxu0
    %716 = vdwg.mxu0
    %v717 = vadd.f32 %v194, %v711
    %v718 = vadd.f32 %v196, %v713
    %v719 = vtanh.pop %v717
    %v720 = vtanh.pop %v718
    %v721 = vpack.c.bf16 %v719, %v719
    %v722 = vpack.c.bf16 %v720, %v720
    %723 = vmatprep.subr.bf16.mxu0 %v331
    %724 = vmatpush1.bf16.msra.mxu0 %v330
    %725 = vmatprep.subr.bf16.mxu0 %v333
    %726 = vmatpush1.bf16.msra.mxu0 %v332
    %727 = vmatprep.subr.bf16.mxu0 %v335
    %728 = vmatpush1.bf16.msra.mxu0 %v334
    %729 = vmatprep.subr.bf16.mxu0 %v337
    %730 = vmatpush1.bf16.msra.mxu0 %v336
    %731 = vmatprep.subr.bf16.mxu0 %v339
    %732 = vmatpush1.bf16.msra.mxu0 %v338
    %733 = vmatprep.subr.bf16.mxu0 %v341
    %734 = vmatpush1.bf16.msra.mxu0 %v340
    %735 = vmatprep.subr.bf16.mxu0 %v343
    %736 = vmatpush1.bf16.msra.mxu0 %v342
    %737 = vmatprep.subr.bf16.mxu0 %v345
    %738 = vmatpush1.bf16.msra.mxu0 %v344
    %739 = vmatprep.subr.bf16.mxu0 %v347
    %740 = vmatpush1.bf16.msra.mxu0 %v346
    %741 = vmatprep.subr.bf16.mxu0 %v349
    %742 = vmatpush1.bf16.msra.mxu0 %v348
    %743 = vmatprep.subr.bf16.mxu0 %v351
    %744 = vmatpush1.bf16.msra.mxu0 %v350
    %745 = vmatprep.subr.bf16.mxu0 %v353
    %746 = vmatpush1.bf16.msra.mxu0 %v352
    %747 = vmatprep.subr.bf16.mxu0 %v355
    %748 = vmatpush1.bf16.msra.mxu0 %v354
    %749 = vmatprep.subr.bf16.mxu0 %v357
    %750 = vmatpush1.bf16.msra.mxu0 %v356
    %751 = vmatprep.subr.bf16.mxu0 %v359
    %752 = vmatpush1.bf16.msra.mxu0 %v358
    %753 = vmatprep.subr.bf16.mxu0 %v361
    %754 = vmatpush1.bf16.msra.mxu0 %v360
    %755 = vmatprep.mubr.bf16.mxu0 %v722
    %756 = vmatmul.mubr.bf16.gmra.mrb[0].mxu0 %v721
    %v757 = vpop.f32.mrb[0].mxu0
    %v758 = vadd.f32 0.0, %v757
    %v759 = vpop.f32.mrb[0].mxu0
    %v760 = vadd.f32 0.0, %v759
    %v761 = vpop.f32.mrb[0].mxu0
    %v762 = vpop.f32.mrb[0].mxu0
    %763 = vdwg.mxu0
    %v764 = vadd.f32 %v198, %v758
    %v765 = vadd.f32 %v200, %v760
    %v766 = vtanh.pop %v764
    %v767 = vtanh.pop %v765
    %v768 = vpack.c.bf16 %v766, %v766
    %v769 = vpack.c.bf16 %v767, %v767
    %v770 = vld [vmem:[#allocation4] sm:$0xf]
    %v771 = vld [vmem:[#allocation4 + $0x4] sm:$0xf]
    %v772 = vld [vmem:[#allocation4 + $0x8] sm:$0xf]
    %v773 = vld [vmem:[#allocation4 + $0xc] sm:$0xf]
    %v774 = vld [vmem:[#allocation4 + $0x10] sm:$0xf]
    %v775 = vld [vmem:[#allocation4 + $0x14] sm:$0xf]
    %v776 = vld [vmem:[#allocation4 + $0x18] sm:$0xf]
    %v777 = vld [vmem:[#allocation4 + $0x1c] sm:$0xf]
    %v778 = vld [vmem:[#allocation4 + $0x20] sm:$0xf]
    %v779 = vld [vmem:[#allocation4 + $0x24] sm:$0xf]
    %v780 = vld [vmem:[#allocation4 + $0x28] sm:$0xf]
    %v781 = vld [vmem:[#allocation4 + $0x2c] sm:$0xf]
    %v782 = vld [vmem:[#allocation4 + $0x30] sm:$0xf]
    %v783 = vld [vmem:[#allocation4 + $0x34] sm:$0xf]
    %v784 = vld [vmem:[#allocation4 + $0x38] sm:$0xf]
    %v785 = vld [vmem:[#allocation4 + $0x3c] sm:$0xf]
    %v786 = vld [vmem:[#allocation4 + $0x40] sm:$0xf]
    %v787 = vld [vmem:[#allocation4 + $0x44] sm:$0xf]
    %v788 = vld [vmem:[#allocation4 + $0x48] sm:$0xf]
    %v789 = vld [vmem:[#allocation4 + $0x4c] sm:$0xf]
    %v790 = vld [vmem:[#allocation4 + $0x50] sm:$0xf]
    %v791 = vld [vmem:[#allocation4 + $0x54] sm:$0xf]
    %v792 = vld [vmem:[#allocation4 + $0x58] sm:$0xf]
    %v793 = vld [vmem:[#allocation4 + $0x5c] sm:$0xf]
    %v794 = vld [vmem:[#allocation4 + $0x60] sm:$0xf]
    %v795 = vld [vmem:[#allocation4 + $0x64] sm:$0xf]
    %v796 = vld [vmem:[#allocation4 + $0x68] sm:$0xf]
    %v797 = vld [vmem:[#allocation4 + $0x6c] sm:$0xf]
    %v798 = vld [vmem:[#allocation4 + $0x70] sm:$0xf]
    %v799 = vld [vmem:[#allocation4 + $0x74] sm:$0xf]
    %v800 = vld [vmem:[#allocation4 + $0x78] sm:$0xf]
    %v801 = vld [vmem:[#allocation4 + $0x7c] sm:$0xf]
    %v802 = vld [vmem:[%s5] sm:$0x1]
    %v804 = vlaneseq
    %v805 = vshrl.u32 %v804, 7
    %v806 = vsub.s32 0, %v805
    %v807 = vrot.slane %v802, %v806
    %v841 = vunpack.c.l.b16 %v770
    %v842 = vunpack.c.l.b16 %v771
    %v843 = vunpack.c.l.b16 %v772
    %v844 = vunpack.c.l.b16 %v773
    %v845 = vunpack.c.l.b16 %v774
    %v846 = vunpack.c.l.b16 %v775
    %v847 = vunpack.c.l.b16 %v776
    %v848 = vunpack.c.l.b16 %v777
    %v849 = vunpack.c.l.b16 %v778
    %v850 = vunpack.c.l.b16 %v779
    %v851 = vunpack.c.l.b16 %v780
    %v852 = vunpack.c.l.b16 %v781
    %v853 = vunpack.c.l.b16 %v782
    %v854 = vunpack.c.l.b16 %v783
    %v855 = vunpack.c.l.b16 %v784
    %v856 = vunpack.c.l.b16 %v785
    %v857 = vunpack.c.l.b16 %v786
    %v858 = vunpack.c.l.b16 %v787
    %v859 = vunpack.c.l.b16 %v788
    %v860 = vunpack.c.l.b16 %v789
    %v861 = vunpack.c.l.b16 %v790
    %v862 = vunpack.c.l.b16 %v791
    %v863 = vunpack.c.l.b16 %v792
    %v864 = vunpack.c.l.b16 %v793
    %v865 = vunpack.c.l.b16 %v794
    %v866 = vunpack.c.l.b16 %v795
    %v867 = vunpack.c.l.b16 %v796
    %v868 = vunpack.c.l.b16 %v797
    %v869 = vunpack.c.l.b16 %v798
    %v870 = vunpack.c.l.b16 %v799
    %v871 = vunpack.c.l.b16 %v800
    %v872 = vunpack.c.l.b16 %v801
    %v873 = vpack.c.b16 %v842, %v841
    %v874 = vpack.c.b16 %v844, %v843
    %v875 = vpack.c.b16 %v846, %v845
    %v876 = vpack.c.b16 %v848, %v847
    %v877 = vpack.c.b16 %v850, %v849
    %v878 = vpack.c.b16 %v852, %v851
    %v879 = vpack.c.b16 %v854, %v853
    %v880 = vpack.c.b16 %v856, %v855
    %v881 = vpack.c.b16 %v858, %v857
    %v882 = vpack.c.b16 %v860, %v859
    %v883 = vpack.c.b16 %v862, %v861
    %v884 = vpack.c.b16 %v864, %v863
    %v885 = vpack.c.b16 %v866, %v865
    %v886 = vpack.c.b16 %v868, %v867
    %v887 = vpack.c.b16 %v870, %v869
    %v888 = vpack.c.b16 %v872, %v871
    %905 = vmatprep.subr.bf16.mxu0 0
    %906 = vmatpush1.bf16.msra.mxu0 %v873
    %907 = vmatprep.subr.bf16.mxu0 0
    %908 = vmatpush1.bf16.msra.mxu0 %v874
    %909 = vmatprep.subr.bf16.mxu0 0
    %910 = vmatpush1.bf16.msra.mxu0 %v875
    %911 = vmatprep.subr.bf16.mxu0 0
    %912 = vmatpush1.bf16.msra.mxu0 %v876
    %913 = vmatprep.subr.bf16.mxu0 0
    %914 = vmatpush1.bf16.msra.mxu0 %v877
    %915 = vmatprep.subr.bf16.mxu0 0
    %916 = vmatpush1.bf16.msra.mxu0 %v878
    %917 = vmatprep.subr.bf16.mxu0 0
    %918 = vmatpush1.bf16.msra.mxu0 %v879
    %919 = vmatprep.subr.bf16.mxu0 0
    %920 = vmatpush1.bf16.msra.mxu0 %v880
    %921 = vmatprep.subr.bf16.mxu0 0
    %922 = vmatpush1.bf16.msra.mxu0 %v881
    %923 = vmatprep.subr.bf16.mxu0 0
    %924 = vmatpush1.bf16.msra.mxu0 %v882
    %925 = vmatprep.subr.bf16.mxu0 0
    %926 = vmatpush1.bf16.msra.mxu0 %v883
    %927 = vmatprep.subr.bf16.mxu0 0
    %928 = vmatpush1.bf16.msra.mxu0 %v884
    %929 = vmatprep.subr.bf16.mxu0 0
    %930 = vmatpush1.bf16.msra.mxu0 %v885
    %931 = vmatprep.subr.bf16.mxu0 0
    %932 = vmatpush1.bf16.msra.mxu0 %v886
    %933 = vmatprep.subr.bf16.mxu0 0
    %934 = vmatpush1.bf16.msra.mxu0 %v887
    %935 = vmatprep.subr.bf16.mxu0 0
    %936 = vmatpush1.bf16.msra.mxu0 %v888
    %937 = vmatprep.mubr.bf16.mxu0 %v769
    %938 = vmatmul.mubr.bf16.gmra.mrb[0].mxu0 %v768
    %v939 = vpop.f32.mrb[0].mxu0
    %v940 = vadd.f32 %v807, %v939
    %v941 = vpop.f32.mrb[0].mxu0
    %v942 = vpop.f32.mrb[0].mxu0
    %v943 = vpop.f32.mrb[0].mxu0
    %944 = vdwg.mxu0
    %945 = vst [vmem:[%s6] sm:$0xff] %v940
    // Predicated region
    $region34: #{words_rnn_forward.1} parent=1 // pred_check
      _
    $region35: #{words_rnn_forward.1} parent=1 // pred_check_branch
      %947 = sbr.rel (0) target = $region37
    $region36: #{words_rnn_forward.1} parent=1 // pred_region
      _
    $region37: #{words_rnn_forward.1} parent=1 // pred_fallthru
      _
    // Predicated region
    $region38: #{words_rnn_forward.1} parent=1 // pred_check
      _
    $region39: #{words_rnn_forward.1} parent=1 // pred_check_branch
      %949 = sbr.rel (0) target = $region41
    $region40: #{words_rnn_forward.1} parent=1 // pred_region
      _
    $region41: #{words_rnn_forward.1} parent=1 // pred_fallthru
      _
    %950 = vsyncpa [#allocation3], 1
    %951 = vsyncpa [#allocation5], 1

</llo_original>
